<compile_context>
chip_gen: v7x
topology: tpu7x:2x2x1
jax: 0.10.0
libtpu: 0.0.40
codegen_flags: <defaults>
</compile_context>

<pallas_src>
import functools

import numpy as np
import jax
import jax.numpy as jnp
from jax import lax
from jax.experimental import pallas as pl
from jax.experimental.pallas import tpu as pltpu

_LANES = 128
_DEF_TILE_ROWS = 2048          # (2048, 128) f32 = 1 MiB per stream
_DEF_TILE_ROWS_PRED_V = 1024   # 6-stream fused-v loss kernel -> 0.5 MiB blocks
_MIN_PALLAS_ELEMS = 32 * 1024  # below this, XLA fusion beats pallas launch cost


# ----------------------------------------------------------------------------
# Beta schedules — host-side, float64, computed once at construction time.
# ----------------------------------------------------------------------------
def linear_beta_schedule(timesteps):
    scale = 1000.0 / timesteps
    return np.linspace(scale * 1e-4, scale * 0.02, timesteps, dtype=np.float64)


def cosine_beta_schedule(timesteps, s=0.008):
    steps = timesteps + 1
    t = np.linspace(0, timesteps, steps, dtype=np.float64) / timesteps
    ac = np.cos((t + s) / (1 + s) * np.pi * 0.5) ** 2
    ac = ac / ac[0]
    betas = 1.0 - ac[1:] / ac[:-1]
    return np.clip(betas, 0.0, 0.999)


def sigmoid_beta_schedule(timesteps, start=-3.0, end=3.0, tau=1.0):
    def sigmoid(z):
        return 1.0 / (1.0 + np.exp(-z))

    steps = timesteps + 1
    t = np.linspace(0, timesteps, steps, dtype=np.float64) / timesteps
    v_start = sigmoid(start / tau)
    v_end = sigmoid(end / tau)
    ac = (-sigmoid((t * (end - start) + start) / tau) + v_end) / (v_end - v_start)
    ac = ac / ac[0]
    betas = 1.0 - ac[1:] / ac[:-1]
    return np.clip(betas, 0.0, 0.999)


# ----------------------------------------------------------------------------
# Lane-dense layout helpers
# ----------------------------------------------------------------------------
def _ceil_div(a, b):
    return -(-a // b)


def _to_lane_major(arr2d):
    """Bitwise-reshape a contiguous (N, C) f32 array into (R, 128) lane-dense
    form, zero-padding only the final <128-element tail of the flattened data."""
    flat = arr2d.reshape(-1)
    m = flat.shape[0]
    r = _ceil_div(m, _LANES)
    pad = r * _LANES - m
    if pad:
        flat = jnp.pad(flat, (0, pad))
    return flat.reshape(r, _LANES)


def _col_to_lane_major(col, c):
    """(N, 1) per-point coefficient -> per-element (R, 128) lane-dense array."""
    return _to_lane_major(jnp.broadcast_to(col, (col.shape[0], c)))


def _pick_tile_rows(r, tile_rows):
    """Block row count: whole array if it fits, else a multiple-of-8 tile."""
    if r <= tile_rows:
        return r
    tr = tile_rows - (tile_rows % 8)
    return max(8, tr)


# ----------------------------------------------------------------------------
# Kernel 1: fused per-element axpby  (q_sample / predict_v)
#   o = a * x + b * y,  all operands lane-dense (TR, 128) blocks.
# ----------------------------------------------------------------------------
def _axpby_kernel(a_ref, x_ref, b_ref, y_ref, o_ref):
    o_ref[...] = a_ref[...] * x_ref[...] + b_ref[...] * y_ref[...]


def _axpby(x, y, a_col, b_col, *, tile_rows=_DEF_TILE_ROWS,
           min_pallas_elems=_MIN_PALLAS_ELEMS):
    n, c = x.shape
    m = n * c
    if m < min_pallas_elems:
        # Tiny problem: pallas_call launch + layout plumbing would dominate;
        # XLA elementwise fusion already hits roofline here.
        return a_col * x + b_col * y

    x2 = _to_lane_major(x)
    y2 = _to_lane_major(y)
    a2 = _col_to_lane_major(a_col, c)
    b2 = _col_to_lane_major(b_col, c)

    r = x2.shape[0]
    tr = _pick_tile_rows(r, tile_rows)
    grid = pl.cdiv(r, tr)
    spec = pl.BlockSpec((tr, _LANES), lambda i: (i, 0))

    out = pl.pallas_call(
        _axpby_kernel,
        out_shape=jax.ShapeDtypeStruct((r, _LANES), jnp.float32),
        grid=(grid,),
        in_specs=[spec, spec, spec, spec],
        out_specs=spec,
        compiler_params=pltpu.CompilerParams(dimension_semantics=("parallel",)),
    )(a2, x2, b2, y2)
    return out.reshape(-1)[:m].reshape(n, c)


# ----------------------------------------------------------------------------
# Kernel 2: fused weighted loss reduction (per-block parallel partial sums)
#   loss_sum = sum_n w[n] * mean_c loss_elem(pred[n,c] - target[n,c])
# Each grid block writes one lane-dense (8, 128) partial tile; wrapper sums.
# ----------------------------------------------------------------------------
def _loss_elem(d, loss_type):
    if loss_type == "l1":
        return jnp.abs(d)
    if loss_type == "l2":
        return d * d
    # smooth_l1, torch default beta = 1.0
    ad = jnp.abs(d)
    return jnp.where(ad < 1.0, 0.5 * d * d, ad - 0.5)


def _emit_partial(contrib, o_ref, rows_total, tile_rows, need_mask):
    if need_mask:  # ragged last block: zero out rows past the array end
        row = (pl.program_id(0) * tile_rows
               + lax.broadcasted_iota(jnp.int32, contrib.shape, 0))
        contrib = jnp.where(row < rows_total, contrib, 0.0)
    partial = jnp.sum(contrib, axis=0, keepdims=True)            # (1, 128)
    sub = lax.broadcasted_iota(jnp.int32, (8, _LANES), 0)
    o_ref[...] = jnp.where(sub == 0,
                           jnp.broadcast_to(partial, (8, _LANES)), 0.0)


def _loss_kernel(pred_ref, tgt_ref, w_ref, o_ref, *, inv_c, loss_type,
                 rows_total, tile_rows, need_mask):
    d = pred_ref[...] - tgt_ref[...]
    contrib = _loss_elem(d, loss_type) * (w_ref[...] * inv_c)
    _emit_partial(contrib, o_ref, rows_total, tile_rows, need_mask)


def _loss_kernel_pred_v(pred_ref, xs_ref, ns_ref, a_ref, b_ref, w_ref, o_ref, *,
                        inv_c, loss_type, rows_total, tile_rows, need_mask):
    # target = a * noise - b * x_start, fused in-register (no HBM round trip).
    target = a_ref[...] * ns_ref[...] - b_ref[...] * xs_ref[...]
    d = pred_ref[...] - target
    contrib = _loss_elem(d, loss_type) * (w_ref[...] * inv_c)
    _emit_partial(contrib, o_ref, rows_total, tile_rows, need_mask)


def _run_loss(kernel_fn, inputs2d, c, loss_type, tile_rows):
    r = inputs2d[0].shape[0]
    tr = _pick_tile_rows(r, tile_rows)
    grid = pl.cdiv(r, tr)
    need_mask = (r % tr) != 0
    spec = pl.BlockSpec((tr, _LANES), lambda i: (i, 0))
    out_spec = pl.BlockSpec((8, _LANES), lambda i: (i, 0))

    partials = pl.pallas_call(
        functools.partial(kernel_fn, inv_c=1.0 / c, loss_type=loss_type,
                          rows_total=r, tile_rows=tr, need_mask=need_mask),
        out_shape=jax.ShapeDtypeStruct((grid * 8, _LANES), jnp.float32),
        grid=(grid,),
        in_specs=[spec] * len(inputs2d),
        out_specs=out_spec,
        compiler_params=pltpu.CompilerParams(dimension_semantics=("parallel",)),
    )(*inputs2d)
    return jnp.sum(partials)


def _weighted_loss_sum(pred, target, w_col, loss_type, *,
                       tile_rows=_DEF_TILE_ROWS):
    n, c = pred.shape
    inputs = [_to_lane_major(pred), _to_lane_major(target),
              _col_to_lane_major(w_col, c)]
    return _run_loss(_loss_kernel, inputs, c, loss_type, tile_rows)


def _weighted_loss_sum_pred_v(pred, x_start, noise, a_col, b_col, w_col,
                              loss_type, *, tile_rows=_DEF_TILE_ROWS_PRED_V):
    n, c = pred.shape
    inputs = [_to_lane_major(pred), _to_lane_major(x_start),
              _to_lane_major(noise), _col_to_lane_major(a_col, c),
              _col_to_lane_major(b_col, c), _col_to_lane_major(w_col, c)]
    return _run_loss(_loss_kernel_pred_v, inputs, c, loss_type, tile_rows)


# ----------------------------------------------------------------------------
# GaussianDiffusion (JAX/Pallas). Sparse ME tensors are represented as a dense
# feature matrix x_feats (N, C) plus per-point batch indices (x.C[:, 0]).
# ----------------------------------------------------------------------------
class GaussianDiffusion:
    def __init__(self, model_fn, timesteps=1000, sampling_timesteps=1000,
                 loss_type="smooth_l1", objective="pred_noise",
                 beta_schedule="sigmoid", schedule_fn_kwargs=None,
                 p2_loss_weight_gamma=0.5, p2_loss_weight_k=1.0):
        assert objective in ("pred_noise", "pred_x0", "pred_v")
        self.model_fn = model_fn
        self.objective = objective
        self.loss_type = loss_type
        self.self_condition = False

        schedule_fn_kwargs = schedule_fn_kwargs or {}
        if beta_schedule == "linear":
            betas = linear_beta_schedule(timesteps, **schedule_fn_kwargs)
        elif beta_schedule == "cosine":
            betas = cosine_beta_schedule(timesteps, **schedule_fn_kwargs)
        elif beta_schedule == "sigmoid":
            betas = sigmoid_beta_schedule(timesteps, **schedule_fn_kwargs)
        else:
            raise ValueError(f"unknown beta schedule {beta_schedule}")

        alphas = 1.0 - betas
        ac = np.cumprod(alphas)
        ac_prev = np.concatenate([[1.0], ac[:-1]])

        self.num_timesteps = int(betas.shape[0])
        self.sampling_timesteps = sampling_timesteps
        assert self.sampling_timesteps <= self.num_timesteps
        self.is_ddim_sampling = self.sampling_timesteps < self.num_timesteps

        f32 = lambda a: jnp.asarray(a, dtype=jnp.float32)
        self.betas = f32(betas)
        self.alphas_cumprod = f32(ac)
        self.alphas_cumprod_prev = f32(ac_prev)
        self.sqrt_alphas_cumprod = f32(np.sqrt(ac))
        self.sqrt_one_minus_alphas_cumprod = f32(np.sqrt(1.0 - ac))
        self.log_one_minus_alphas_cumprod = f32(np.log(1.0 - ac))
        self.sqrt_recip_alphas_cumprod = f32(np.sqrt(1.0 / ac))
        self.sqrt_recipm1_alphas_cumprod = f32(np.sqrt(1.0 / ac - 1.0))
        post_var = betas * (1.0 - ac_prev) / (1.0 - ac)
        self.posterior_variance = f32(post_var)
        self.posterior_log_variance_clipped = f32(np.log(np.clip(post_var, 1e-20, None)))
        self.posterior_mean_coef1 = f32(betas * np.sqrt(ac_prev) / (1.0 - ac))
        self.posterior_mean_coef2 = f32((1.0 - ac_prev) * np.sqrt(alphas) / (1.0 - ac))
        self.p2_loss_weight = f32(
            (p2_loss_weight_k + ac / (1.0 - ac)) ** (-p2_loss_weight_gamma))

        # Stacked lookup table -> a single XLA gather per p_losses call.
        self._loss_coef_table = jnp.stack(
            [self.sqrt_alphas_cumprod,
             self.sqrt_one_minus_alphas_cumprod,
             self.p2_loss_weight], axis=1)                     # (T, 3)

    # ME `extract(param, t, x)` analogue: per-point schedule coefficient column.
    def _extract(self, buf, t, batch_idx):
        return buf[t[batch_idx]][:, None]  # (N, 1)

    def q_sample(self, x_start, t, batch_idx, noise):
        a = self._extract(self.sqrt_alphas_cumprod, t, batch_idx)
        b = self._extract(self.sqrt_one_minus_alphas_cumprod, t, batch_idx)
        return _axpby(x_start, noise, a, b)

    def predict_v(self, x_start, t, batch_idx, noise):
        a = self._extract(self.sqrt_alphas_cumprod, t, batch_idx)
        b = self._extract(self.sqrt_one_minus_alphas_cumprod, t, batch_idx)
        return _axpby(noise, x_start, a, -b)

    def p_losses(self, x_start, batch_idx, t, noise):
        n = x_start.shape[0]
        coefs = self._loss_coef_table[t[batch_idx]]            # (N, 3), 1 gather
        a, b, w = coefs[:, 0:1], coefs[:, 1:2], coefs[:, 2:3]

        x_noisy = _axpby(x_start, noise, a, b)                 # q_sample
        model_out = self.model_fn(x_noisy, t, batch_idx)

        if self.objective == "pred_noise":
            loss_sum = _weighted_loss_sum(model_out, noise, w, self.loss_type)
        elif self.objective == "pred_x0":
            loss_sum = _weighted_loss_sum(model_out, x_start, w, self.loss_type)
        else:  # pred_v: fuse target = a*noise - b*x_start into the loss kernel
            loss_sum = _weighted_loss_sum_pred_v(
                model_out, x_start, noise, a, b, w, self.loss_type)
        return loss_sum / n

    def forward(self, x_start, batch_idx, batch_size, key, fix_t=None):
        k_t, k_n = jax.random.split(key)
        t = jax.random.randint(k_t, (batch_size,), 0, self.num_timesteps,
                               dtype=jnp.int32)
        if fix_t is not None:
            t = jnp.full((batch_size,), fix_t, dtype=jnp.int32)
        noise = jax.random.normal(k_n, x_start.shape, dtype=jnp.float32)
        return self.p_losses(x_start, batch_idx, t, noise)


# ----------------------------------------------------------------------------
# Placeholder denoiser.
# TODO(synk): the real model is a MinkowskiEngine sparse-conv UNet (with a
# sinusoidal-time MLP); sparse convolutions have no clean Pallas equivalent
# here, so the model is stubbed as identity on the features.
def identity_model(x_feats, t, batch_idx):
    return x_feats


# Pure-JAX reference of p_losses (identity model).
def _reference_p_losses(diff, x_start, batch_idx, t, noise):
    t_pt = t[batch_idx]
    a = diff.sqrt_alphas_cumprod[t_pt][:, None]
    b = diff.sqrt_one_minus_alphas_cumprod[t_pt][:, None]
    x_noisy = a * x_start + b * noise
    model_out = x_noisy
    if diff.objective == "pred_noise":
        target = noise
    elif diff.objective == "pred_x0":
        target = x_start
    else:
        target = a * noise - b * x_start
    d = model_out - target
    if diff.loss_type == "l1":
        elem = jnp.abs(d)
    elif diff.loss_type == "l2":
        elem = d * d
    else:
        ad = jnp.abs(d)
        elem = jnp.where(ad < 1.0, 0.5 * d * d, ad - 0.5)
    per_pt = elem.mean(axis=1)
    w = diff.p2_loss_weight[t_pt]
    return (per_pt * w).mean()


if __name__ == "__main__":
    key = jax.random.PRNGKey(0)
    TIMESTEPS = 1000

    # ---- Test 1: small demo size (XLA fallback for q_sample, Pallas loss). --
    B, N, C = 2, 96, 4
    k_x, k_t, k_n, k_fwd, k_rest = jax.random.split(key, 5)
    x_feats = jax.random.normal(k_x, (N, C), dtype=jnp.float32)       # x.F
    batch_idx = jnp.repeat(jnp.arange(B, dtype=jnp.int32), N // B)    # x.C[:, 0]
    t = jax.random.randint(k_t, (B,), 0, TIMESTEPS, dtype=jnp.int32)
    noise = jax.random.normal(k_n, (N, C), dtype=jnp.float32)

    diffusion = GaussianDiffusion(identity_model, timesteps=TIMESTEPS)
    loss = jax.block_until_ready(diffusion.p_losses(x_feats, batch_idx, t, noise))
    ref = _reference_p_losses(diffusion, x_feats, batch_idx, t, noise)
    assert loss.shape == ()
    assert jnp.allclose(loss, ref, atol=1e-5, rtol=1e-4), (loss, ref)

    # ---- Test 2: medium size -> lane-dense Pallas axpby + loss (1 block). ---
    B2, N2 = 4, 32768
    k2a, k2b, k2c = jax.random.split(k_rest, 3)
    x2 = jax.random.normal(k2a, (N2, C), dtype=jnp.float32)
    bidx2 = jnp.repeat(jnp.arange(B2, dtype=jnp.int32), N2 // B2)
    t2 = jax.random.randint(k2b, (B2,), 0, TIMESTEPS, dtype=jnp.int32)
    n2 = jax.random.normal(k2c, (N2, C), dtype=jnp.float32)

    loss2 = jax.block_until_ready(diffusion.p_losses(x2, bidx2, t2, n2))
    ref2 = _reference_p_losses(diffusion, x2, bidx2, t2, n2)
    assert jnp.allclose(loss2, ref2, atol=1e-5, rtol=1e-4), (loss2, ref2)

    # pred_v objective: fused target-in-loss kernel.
    diffusion_v = GaussianDiffusion(identity_model, timesteps=TIMESTEPS,
                                    objective="pred_v")
    loss_v = jax.block_until_ready(diffusion_v.p_losses(x2, bidx2, t2, n2))
    ref_v = _reference_p_losses(diffusion_v, x2, bidx2, t2, n2)
    assert jnp.allclose(loss_v, ref_v, atol=1e-5, rtol=1e-4), (loss_v, ref_v)

    # ---- Test 3: multi-block + ragged-tail path (forced small tiles). -------
    N3 = 9000
    k3a, k3b, k3c = jax.random.split(k_fwd, 3)
    x3 = jax.random.normal(k3a, (N3, C), dtype=jnp.float32)
    y3 = jax.random.normal(k3b, (N3, C), dtype=jnp.float32)
    a3 = jax.random.uniform(k3c, (N3, 1), dtype=jnp.float32)
    b3 = 1.0 - a3
    w3 = 0.5 * a3 + 0.25
    z3 = jax.block_until_ready(
        _axpby(x3, y3, a3, b3, tile_rows=128, min_pallas_elems=0))
    assert jnp.allclose(z3, a3 * x3 + b3 * y3, atol=1e-6, rtol=1e-6)
    ls3 = jax.block_until_ready(
        _weighted_loss_sum(z3, y3, w3, "smooth_l1", tile_rows=128))
    d3 = z3 - y3
    ad3 = jnp.abs(d3)
    el3 = jnp.where(ad3 < 1.0, 0.5 * d3 * d3, ad3 - 0.5)
    ref3 = jnp.sum(el3.mean(axis=1) * w3[:, 0])
    assert jnp.allclose(ls3, ref3, atol=1e-4, rtol=1e-4), (ls3, ref3)

    # ---- Stochastic forward() entry point. ----------------------------------
    loss_fwd = jax.block_until_ready(
        diffusion.forward(x_feats, batch_idx, B, k_fwd))
    assert bool(jnp.isfinite(loss_fwd))

    print("KERNEL_OK")
</pallas_src>

<mosaic_0001>
module attributes {stable_mosaic.version = 11 : i64} {
  func.func @_loss_kernel(%arg0: i32, %arg1: memref<3x128xf32, #tpu.memory_space<vmem>>, %arg2: memref<3x128xf32, #tpu.memory_space<vmem>>, %arg3: memref<3x128xf32, #tpu.memory_space<vmem>>, %arg4: memref<8x128xf32, #tpu.memory_space<vmem>>) attributes {dimension_semantics = [#tpu.dimension_semantics<parallel>], iteration_bounds = array<i64: 1>, scalar_prefetch = 0 : i64, scratch_operands = 0 : i64, tpu.core_type = #tpu.core_type<tc>, window_params = [{transform_indices = @transform_0, window_bounds = array<i64: 3, 128>}, {transform_indices = @transform_1, window_bounds = array<i64: 3, 128>}, {transform_indices = @transform_2, window_bounds = array<i64: 3, 128>}, {transform_indices = @transform_3, window_bounds = array<i64: 8, 128>}]} {
    %c0 = arith.constant 0 : index
    %c0_0 = arith.constant 0 : index
    %0 = vector.load %arg1[%c0, %c0_0] : memref<3x128xf32, #tpu.memory_space<vmem>>, vector<3x128xf32>
    %c0_1 = arith.constant 0 : index
    %c0_2 = arith.constant 0 : index
    %1 = vector.load %arg2[%c0_1, %c0_2] : memref<3x128xf32, #tpu.memory_space<vmem>>, vector<3x128xf32>
    %2 = arith.subf %0, %1 : vector<3x128xf32>
    %3 = math.absf %2 : vector<3x128xf32>
    %cst = arith.constant 1.000000e+00 : f32
    %4 = vector.broadcast %cst : f32 to vector<3x128xf32>
    %5 = arith.cmpf olt, %3, %4 : vector<3x128xf32>
    %cst_3 = arith.constant 5.000000e-01 : f32
    %6 = vector.broadcast %cst_3 : f32 to vector<3x128xf32>
    %7 = arith.mulf %6, %2 : vector<3x128xf32>
    %8 = arith.mulf %7, %2 : vector<3x128xf32>
    %cst_4 = arith.constant 5.000000e-01 : f32
    %9 = vector.broadcast %cst_4 : f32 to vector<3x128xf32>
    %10 = arith.subf %3, %9 : vector<3x128xf32>
    %11 = arith.select %5, %8, %10 : vector<3x128xi1>, vector<3x128xf32>
    %c0_5 = arith.constant 0 : index
    %c0_6 = arith.constant 0 : index
    %12 = vector.load %arg3[%c0_5, %c0_6] : memref<3x128xf32, #tpu.memory_space<vmem>>, vector<3x128xf32>
    %cst_7 = arith.constant 2.500000e-01 : f32
    %13 = vector.broadcast %cst_7 : f32 to vector<3x128xf32>
    %14 = arith.mulf %12, %13 : vector<3x128xf32>
    %15 = arith.mulf %11, %14 : vector<3x128xf32>
    %cst_8 = arith.constant dense<0.000000e+00> : vector<128xf32>
    %16 = vector.multi_reduction <add>, %15, %cst_8 [0] : vector<3x128xf32> to vector<128xf32>
    %17 = vector.shape_cast %16 : vector<128xf32> to vector<1x128xf32>
    %18 = tpu.iota {dimensions = array<i32: 0>} : vector<8x128xi32>
    %c0_i32 = arith.constant 0 : i32
    %19 = vector.broadcast %c0_i32 : i32 to vector<8x128xi32>
    %20 = arith.cmpi eq, %18, %19 : vector<8x128xi32>
    %21 = vector.shape_cast %17 : vector<1x128xf32> to vector<1x128xf32>
    %22 = vector.broadcast %21 : vector<1x128xf32> to vector<8x128xf32>
    %cst_9 = arith.constant 0.000000e+00 : f32
    %23 = vector.broadcast %cst_9 : f32 to vector<8x128xf32>
    %24 = arith.select %20, %22, %23 : vector<8x128xi1>, vector<8x128xf32>
    %c0_10 = arith.constant 0 : index
    %c0_11 = arith.constant 0 : index
    %25 = vector.load %arg4[%c0_10, %c0_11] : memref<8x128xf32, #tpu.memory_space<vmem>>, vector<8x128xf32>
    tpu.vector_store %arg4[%c0_10, %c0_11], %24 {strides = array<i32>} : memref<8x128xf32, #tpu.memory_space<vmem>>, vector<8x128xf32>,
    return
  }
  func.func @transform_0(%arg0: i32) -> (i32, i32) {
    %c0_i32 = arith.constant 0 : i32
    %c0_i32_0 = arith.constant 0 : i32
    return %arg0, %c0_i32 : i32, i32
  }
  func.func @transform_1(%arg0: i32) -> (i32, i32) {
    %c0_i32 = arith.constant 0 : i32
    %c0_i32_0 = arith.constant 0 : i32
    return %arg0, %c0_i32 : i32, i32
  }
  func.func @transform_2(%arg0: i32) -> (i32, i32) {
    %c0_i32 = arith.constant 0 : i32
    %c0_i32_0 = arith.constant 0 : i32
    return %arg0, %c0_i32 : i32, i32
  }
  func.func @transform_3(%arg0: i32) -> (i32, i32) {
    %c0_i32 = arith.constant 0 : i32
    %c0_i32_0 = arith.constant 0 : i32
    return %arg0, %c0_i32 : i32, i32
  }
}

</mosaic_0001>

<llo_original>
// kernel: tpu_custom_call.1
$region0: #{tpu_custom_call.1}
  #allocation0 [shape = 'u32[]', space=smem, size = 0x4, offset = 0x4, fixed_abs, tag = 'smem constant byte address 0x4 - core index']
  #allocation1 [shape = 'u32[144,128]{1,0:T(1,128)}', space=vmem, size = 0x12000, scoped, tag = 'internal scratch']
  %s0 = inlined_call_operand.hbm [shape: f32[3,128], index: 0, kind: input, shape index: {}]
  %s1 = inlined_call_operand.hbm [shape: f32[3,128], index: 1, kind: input, shape index: {}]
  %s2 = inlined_call_operand.vmem [shape: f32[3,128], index: 2, kind: input, shape index: {}]
  %s3 = inlined_call_operand.hbm [shape: f32[8,128], index: 3, kind: output, shape index: {}]
  %s4 = sld [smem:[#allocation0]]
  $region30: #{tpu_custom_call.1} parent=0
    _
  %s6 = ssub.s32 1, %s4
  %s7 = scalar_select 0, %s6, %s4
  $region1: #{tpu_custom_call.1} parent=0
    #allocation2 [shape = 'u8[2048]{0}', space=vmem, size = 0x800, scoped, tag = 'input window, operand 0, single buffered']
    #allocation3 [shape = 's32[1]{0}', space=sflag, size = 0x4, scoped, tag = 'scoped memory for tpu_custom_call.1']
    #allocation4 [shape = 's32[1]{0}', space=sflag, size = 0x4, scoped, tag = 'scoped memory for tpu_custom_call.1']
    #allocation5 [shape = 'u8[2048]{0}', space=vmem, size = 0x800, scoped, tag = 'input window, operand 1, single buffered']
    #allocation6 [shape = 's32[1]{0}', space=sflag, size = 0x4, scoped, tag = 'scoped memory for tpu_custom_call.1']
    #allocation7 [shape = 'u8[4096]{0}', space=vmem, size = 0x1000, scoped, tag = 'output window, operand 0, single buffered']
    %8 = vsyncpa [#allocation3], 0
    %9 = vsyncpa [#allocation6], 0
    %10 = vsyncpa [#allocation4], 0
    // Predicated region
    $region2: #{tpu_custom_call.1} parent=1 // pred_check
      _
    $region3: #{tpu_custom_call.1} parent=1 // pred_check_branch
      %12 = sbr.rel (0) target = $region5
    $region4: #{tpu_custom_call.1} parent=1 // pred_region
      %s14 = ssub.s32 64, 64
      %15 = vsyncadd [#allocation3], %s14
      %s17 = sshll.u32 [#allocation2], 4
      %s18 = int_to_ptr.vmem [resolvable:$true] %s17
      %20 = dma.hbm_to_vmem [thread:$0]  %s0, 64, %s18, [#allocation3]
    $region5: #{tpu_custom_call.1} parent=1 // pred_fallthru
      _
    // Predicated region
    $region6: #{tpu_custom_call.1} parent=1 // pred_check
      _
    $region7: #{tpu_custom_call.1} parent=1 // pred_check_branch
      %22 = sbr.rel (0) target = $region9
    $region8: #{tpu_custom_call.1} parent=1 // pred_region
      %s24 = ssub.s32 64, 64
      %25 = vsyncadd [#allocation6], %s24
      %s27 = sshll.u32 [#allocation5], 4
      %s28 = int_to_ptr.vmem [resolvable:$true] %s27
      %30 = dma.hbm_to_vmem [thread:$0]  %s1, 64, %s28, [#allocation6]
    $region9: #{tpu_custom_call.1} parent=1 // pred_fallthru
      _
    // Predicated region
    $region10: #{tpu_custom_call.1} parent=1 // pred_check
      _
    $region11: #{tpu_custom_call.1} parent=1 // pred_check_branch
      %32 = sbr.rel (0) target = $region13
    $region12: #{tpu_custom_call.1} parent=1 // pred_region
      _
    $region13: #{tpu_custom_call.1} parent=1 // pred_fallthru
      _
    // Predicated region
    $region14: #{tpu_custom_call.1} parent=1 // pred_check
      _
    $region15: #{tpu_custom_call.1} parent=1 // pred_check_branch
      %34 = sbr.rel (0) target = $region17
    $region16: #{tpu_custom_call.1} parent=1 // pred_region
      %35 = dma.done [#allocation3], 64
    $region17: #{tpu_custom_call.1} parent=1 // pred_fallthru
      _
    // Predicated region
    $region18: #{tpu_custom_call.1} parent=1 // pred_check
      _
    $region19: #{tpu_custom_call.1} parent=1 // pred_check_branch
      %37 = sbr.rel (0) target = $region21
    $region20: #{tpu_custom_call.1} parent=1 // pred_region
      %38 = dma.done [#allocation6], 64
    $region21: #{tpu_custom_call.1} parent=1 // pred_fallthru
      _
    %v39 = vld [vmem:[#allocation2] sm:$0x7]
    %v40 = vld [vmem:[#allocation5] sm:$0x7]
    %v41 = vsub.f32 %v39, %v40
    %v42 = vand.u32 2147483647, %v41
    %vm43 = vcmp.lt.f32.partialorder %v42, 1.0
    %v44 = vmul.f32 %v41, 0.5
    %v45 = vmul.f32 %v44, %v41
    %v46 = vsub.f32 %v42, 0.5
    %v47 = vsel %vm43, %v45, %v46
    %v48 = vld [vmem:[%s2] sm:$0x7]
    %v49 = vmul.f32 %v48, 0.25
    %v50 = vmul.f32 %v47, %v49
    %vm51 = vcmask 1042432
    %v52 = vsel %vm51, %v50, 0.0
    %v53 = vrot.slane %v52, 4
    %v54 = vadd.f32 %v52, %v53
    %v55 = vrot.slane %v54, 2
    %v56 = vadd.f32 %v54, %v55
    %v57 = vrot.slane %v56, 1
    %v58 = vadd.f32 %v56, %v57
    %v59 = vlaneseq
    %v60 = vshrl.u32 %v59, 7
    %vm61 = vcmp.eq.s32.totalorder %v60, 0
    %v62 = vsel %vm61, %v58, 0.0
    %63 = vst [vmem:[#allocation7] sm:$0xff] %v62
    // Predicated region
    $region22: #{tpu_custom_call.1} parent=1 // pred_check
      _
    $region23: #{tpu_custom_call.1} parent=1 // pred_check_branch
      %65 = sbr.rel (0) target = $region25
    $region24: #{tpu_custom_call.1} parent=1 // pred_region
      %s67 = ssub.s32 128, 128
      %68 = vsyncadd [#allocation4], %s67
      %s70 = sshll.u32 [#allocation7], 4
      %s71 = int_to_ptr.vmem [resolvable:$true] %s70
      %73 = dma.vmem_to_hbm [thread:$0]  %s71, 128, %s3, [#allocation4]
    $region25: #{tpu_custom_call.1} parent=1 // pred_fallthru
      _
    // Predicated region
    $region26: #{tpu_custom_call.1} parent=1 // pred_check
      _
    $region27: #{tpu_custom_call.1} parent=1 // pred_check_branch
      %75 = sbr.rel (0) target = $region29
    $region28: #{tpu_custom_call.1} parent=1 // pred_region
      %76 = dma.done [#allocation4], 128
    $region29: #{tpu_custom_call.1} parent=1 // pred_fallthru
      _
    %77 = vsyncpa [#allocation3], 1
    %78 = vsyncpa [#allocation6], 1
    %79 = vsyncpa [#allocation4], 1

</llo_original>
